<compile_context>
chip_gen: v7x
topology: tpu7x:2x2x1
jax: 0.10.0
libtpu: 0.0.40
codegen_flags: <defaults>
</compile_context>

<pallas_src>
import jax
import jax.numpy as jnp
from jax.experimental import pallas as pl
from jax.experimental.pallas import tpu as pltpu

EPS = 1e-5                      # nn.BatchNorm2d default eps
LANES = 128                     # lane-dense padded width for layer2/layer3
VMEM_LIMIT = 32 * 1024 * 1024   # safe on v5e/v6e/v7x; tiles here use only a few MiB


def _round_up(a, b):
    return ((a + b - 1) // b) * b


# --------------------------------------------------------------------------
# Kernels
# --------------------------------------------------------------------------
def _make_stats1_kernel(n_true, tm, n_pad):
    """Pass 1: h1 = relu(x @ w1 + b1); accumulate sum / sum-of-squares (bn1)."""
    masked = n_pad != n_true

    def kernel(x_ref, w1_ref, b1_ref, sum_ref, sq_ref):
        i = pl.program_id(0)

        @pl.when(i == 0)
        def _():
            sum_ref[...] = jnp.zeros_like(sum_ref)
            sq_ref[...] = jnp.zeros_like(sq_ref)

        h1 = jnp.dot(x_ref[...], w1_ref[...],
                     preferred_element_type=jnp.float32) + b1_ref[...]
        h1 = jnp.maximum(h1, 0.0)
        if masked:  # exclude zero-padded tail rows from the batch statistics
            row = i * tm + jax.lax.broadcasted_iota(jnp.int32, (tm, 1), 0)
            h1 = jnp.where(row < n_true, h1, 0.0)
        sum_ref[...] += jnp.sum(h1, axis=0, keepdims=True)
        sq_ref[...] += jnp.sum(h1 * h1, axis=0, keepdims=True)

    return kernel


def _make_stats2_kernel(n_true, tm, n_pad):
    """Pass 2: recompute h1, apply bn1, h2 = relu(. @ w2 + b2); accumulate bn2 stats."""
    masked = n_pad != n_true

    def kernel(x_ref, w1_ref, b1_ref, s1_ref, t1_ref, w2_ref, b2_ref,
               sum_ref, sq_ref):
        i = pl.program_id(0)

        @pl.when(i == 0)
        def _():
            sum_ref[...] = jnp.zeros_like(sum_ref)
            sq_ref[...] = jnp.zeros_like(sq_ref)

        h1 = jnp.dot(x_ref[...], w1_ref[...],
                     preferred_element_type=jnp.float32) + b1_ref[...]
        h1 = jnp.maximum(h1, 0.0)
        h1n = (h1 * s1_ref[...] + t1_ref[...]).astype(jnp.bfloat16)
        h2 = jnp.dot(h1n, w2_ref[...],
                     preferred_element_type=jnp.float32) + b2_ref[...]
        h2 = jnp.maximum(h2, 0.0)
        if masked:
            row = i * tm + jax.lax.broadcasted_iota(jnp.int32, (tm, 1), 0)
            h2 = jnp.where(row < n_true, h2, 0.0)
        sum_ref[...] += jnp.sum(h2, axis=0, keepdims=True)
        sq_ref[...] += jnp.sum(h2 * h2, axis=0, keepdims=True)

    return kernel


def _final_kernel(x_ref, w1_ref, b1_ref, s1_ref, t1_ref,
                  w2_ref, b2_ref, s2_ref, t2_ref, w3_ref, b3_ref, o_ref):
    """Pass 3: full forward with the global bn1/bn2 scale+shift; lane-dense store."""
    h1 = jnp.dot(x_ref[...], w1_ref[...],
                 preferred_element_type=jnp.float32) + b1_ref[...]
    h1 = jnp.maximum(h1, 0.0)
    h1n = (h1 * s1_ref[...] + t1_ref[...]).astype(jnp.bfloat16)
    h2 = jnp.dot(h1n, w2_ref[...],
                 preferred_element_type=jnp.float32) + b2_ref[...]
    h2 = jnp.maximum(h2, 0.0)
    h2n = (h2 * s2_ref[...] + t2_ref[...]).astype(jnp.bfloat16)
    o_ref[...] = (jnp.dot(h2n, w3_ref[...],
                          preferred_element_type=jnp.float32)
                  + b3_ref[...]).astype(o_ref.dtype)


# --------------------------------------------------------------------------
# Wrapper
# --------------------------------------------------------------------------
def feature_voter_forward(x_nhwc, params, *, tile_rows=2048):
    """x_nhwc: (B, H, W, dim) float32 -> (B, H, W, numpy_class) float32."""
    w1, b1, g1, be1, w2, b2, g2, be2, w3, b3 = params
    B, H, W, D = x_nhwc.shape
    N = B * H * W
    C = w3.shape[1]
    assert C <= LANES and w2.shape[1] <= LANES and w1.shape[1] == 128

    # Row-tile size (multiple of 8 sublanes); pad N up to a whole number of tiles.
    tm = max(8, min(_round_up(tile_rows, 8), _round_up(N, 8)))
    n_pad = _round_up(N, tm)
    n_tiles = n_pad // tm

    x2d = x_nhwc.reshape(N, D).astype(jnp.float32)
    if n_pad > N:
        x2d = jnp.pad(x2d, ((0, n_pad - N), (0, 0)))
    x_bf = x2d.astype(jnp.bfloat16)                      # halve x HBM traffic

    # Zero-pad layer2/layer3 to a lane-dense 128 width; padded bn2 channels are
    # exactly zero (g2 pad = 0, be2 pad = 0, w3 pad rows/cols = 0), so the math
    # is unchanged and the wrapper slices the output back to C columns.
    def padc(a):
        return jnp.pad(a, ((0, 0), (0, LANES - a.shape[1])))

    w1_bf = w1.astype(jnp.bfloat16)                      # (D, 128)
    w2p_bf = padc(w2).astype(jnp.bfloat16)               # (128, 128)
    b2p, g2p, be2p = padc(b2), padc(g2), padc(be2)
    w3p_bf = jnp.pad(
        w3, ((0, LANES - w3.shape[0]), (0, LANES - C))).astype(jnp.bfloat16)
    b3p = padc(b3)

    def const_spec(shape):
        nd = len(shape)
        return pl.BlockSpec(shape, lambda i, _nd=nd: (0,) * _nd)

    x_spec = pl.BlockSpec((tm, D), lambda i: (i, 0))
    stat_shape = jax.ShapeDtypeStruct((1, 128), jnp.float32)
    stat_spec = const_spec((1, 128))

    # ---- pass 1: bn1 moments -------------------------------------------------
    sum1, sq1 = pl.pallas_call(
        _make_stats1_kernel(N, tm, n_pad),
        out_shape=(stat_shape, stat_shape),
        grid=(n_tiles,),
        in_specs=[x_spec, const_spec(w1_bf.shape), const_spec(b1.shape)],
        out_specs=[stat_spec, stat_spec],
        compiler_params=pltpu.CompilerParams(
            dimension_semantics=("arbitrary",),
            vmem_limit_bytes=VMEM_LIMIT),
    )(x_bf, w1_bf, b1)

    inv_n = 1.0 / float(N)
    mean1 = sum1 * inv_n
    var1 = jnp.maximum(sq1 * inv_n - mean1 * mean1, 0.0)   # biased variance
    scale1 = g1 * jax.lax.rsqrt(var1 + EPS)
    shift1 = be1 - mean1 * scale1

    # ---- pass 2: bn2 moments -------------------------------------------------
    sum2, sq2 = pl.pallas_call(
        _make_stats2_kernel(N, tm, n_pad),
        out_shape=(stat_shape, stat_shape),
        grid=(n_tiles,),
        in_specs=[x_spec, const_spec(w1_bf.shape), const_spec(b1.shape),
                  const_spec(scale1.shape), const_spec(shift1.shape),
                  const_spec(w2p_bf.shape), const_spec(b2p.shape)],
        out_specs=[stat_spec, stat_spec],
        compiler_params=pltpu.CompilerParams(
            dimension_semantics=("arbitrary",),
            vmem_limit_bytes=VMEM_LIMIT),
    )(x_bf, w1_bf, b1, scale1, shift1, w2p_bf, b2p)

    mean2 = sum2 * inv_n
    var2 = jnp.maximum(sq2 * inv_n - mean2 * mean2, 0.0)
    scale2 = g2p * jax.lax.rsqrt(var2 + EPS)               # padded channels -> 0
    shift2 = be2p - mean2 * scale2

    # ---- pass 3: normalized forward + lane-dense output ----------------------
    out_pad = pl.pallas_call(
        _final_kernel,
        out_shape=jax.ShapeDtypeStruct((n_pad, LANES), jnp.float32),
        grid=(n_tiles,),
        in_specs=[x_spec, const_spec(w1_bf.shape), const_spec(b1.shape),
                  const_spec(scale1.shape), const_spec(shift1.shape),
                  const_spec(w2p_bf.shape), const_spec(b2p.shape),
                  const_spec(scale2.shape), const_spec(shift2.shape),
                  const_spec(w3p_bf.shape), const_spec(b3p.shape)],
        out_specs=pl.BlockSpec((tm, LANES), lambda i: (i, 0)),
        compiler_params=pltpu.CompilerParams(
            dimension_semantics=("parallel",),          # megacore on v7x
            vmem_limit_bytes=VMEM_LIMIT),
    )(x_bf, w1_bf, b1, scale1, shift1, w2p_bf, b2p, scale2, shift2, w3p_bf, b3p)

    return out_pad[:N, :C].reshape(B, H, W, C)


# --------------------------------------------------------------------------
# References (for verification)
# --------------------------------------------------------------------------
def ref_forward(x_nhwc, params):
    """Pure-JAX f32 reference with the module's exact semantics."""
    w1, b1, g1, be1, w2, b2, g2, be2, w3, b3 = params
    B, H, W, D = x_nhwc.shape
    x = x_nhwc.reshape(B * H * W, D)

    def bn(h, g, be):
        m = jnp.mean(h, axis=0, keepdims=True)
        v = jnp.mean((h - m) ** 2, axis=0, keepdims=True)   # biased variance
        return (h - m) * jax.lax.rsqrt(v + EPS) * g + be

    h = jnp.maximum(x @ w1 + b1, 0.0)
    h = bn(h, g1, be1)
    h = jnp.maximum(h @ w2 + b2, 0.0)
    h = bn(h, g2, be2)
    o = h @ w3 + b3
    return o.reshape(B, H, W, w3.shape[1])


def ref_forward_bf16(x_nhwc, params):
    """Reference that mirrors the kernel's bf16-matmul / f32-BN numerics."""
    w1, b1, g1, be1, w2, b2, g2, be2, w3, b3 = params
    B, H, W, D = x_nhwc.shape
    x = x_nhwc.reshape(B * H * W, D).astype(jnp.bfloat16)

    def bn(h, g, be):
        m = jnp.mean(h, axis=0, keepdims=True)
        v = jnp.maximum(jnp.mean(h * h, axis=0, keepdims=True) - m * m, 0.0)
        s = g * jax.lax.rsqrt(v + EPS)
        return h * s + (be - m * s)

    h1 = jnp.maximum(jnp.dot(x, w1.astype(jnp.bfloat16),
                             preferred_element_type=jnp.float32) + b1, 0.0)
    h1n = bn(h1, g1, be1).astype(jnp.bfloat16)
    h2 = jnp.maximum(jnp.dot(h1n, w2.astype(jnp.bfloat16),
                             preferred_element_type=jnp.float32) + b2, 0.0)
    h2n = bn(h2, g2, be2).astype(jnp.bfloat16)
    o = jnp.dot(h2n, w3.astype(jnp.bfloat16),
                preferred_element_type=jnp.float32) + b3
    return o.reshape(B, H, W, w3.shape[1])


def make_params(key, dim, numpy_class, gain=0.02):
    """Deterministic init mirroring init_weights('normal', 0.02):
    Linear weights ~ N(0, 0.02) (stored (in, out)), biases 0;
    BN weight ~ N(1, 0.02), bias 0."""
    assert numpy_class < 30, "this script implements the numpy_class < 30 branch"
    k1, k2, k3, k4, k5 = jax.random.split(key, 5)
    w1 = gain * jax.random.normal(k1, (dim, 128), jnp.float32)
    b1 = jnp.zeros((1, 128), jnp.float32)
    w2 = gain * jax.random.normal(k2, (128, 32), jnp.float32)
    b2 = jnp.zeros((1, 32), jnp.float32)
    w3 = gain * jax.random.normal(k3, (32, numpy_class), jnp.float32)
    b3 = jnp.zeros((1, numpy_class), jnp.float32)
    g1 = 1.0 + gain * jax.random.normal(k4, (1, 128), jnp.float32)
    be1 = jnp.zeros((1, 128), jnp.float32)
    g2 = 1.0 + gain * jax.random.normal(k5, (1, 32), jnp.float32)
    be2 = jnp.zeros((1, 32), jnp.float32)
    return (w1, b1, g1, be1, w2, b2, g2, be2, w3, b3)


if __name__ == "__main__":
    B, H, W, dim = 2, 16, 16, 32
    numpy_class = 10

    key = jax.random.PRNGKey(0)
    kx, kp = jax.random.split(key)
    x = jax.random.normal(kx, (B, H, W, dim), jnp.float32)
    params = make_params(kp, dim, numpy_class)

    ref32 = ref_forward(x, params)
    ref16 = ref_forward_bf16(x, params)

    # Exercise both the evenly-tiled path (512 % 128 == 0) and the padded-tail
    # path (512 -> 576 rows with tile 192, masked BN statistics).
    for tile_rows in (128, 192):
        out = feature_voter_forward(x, params, tile_rows=tile_rows)
        out = jax.block_until_ready(out)
        assert out.shape == (B, H, W, numpy_class)
        assert jnp.allclose(out, ref16, rtol=2e-2, atol=5e-3), \
            f"mismatch vs bf16-matmul reference (tile_rows={tile_rows})"
        assert jnp.allclose(out, ref32, rtol=3e-2, atol=3e-2), \
            f"mismatch vs f32 reference (tile_rows={tile_rows})"

    print("KERNEL_OK")
</pallas_src>

<mosaic_0001>
module attributes {stable_mosaic.version = 11 : i64} {
  func.func @kernel(%arg0: i32, %arg1: memref<128x32xbf16, #tpu.memory_space<vmem>>, %arg2: memref<32x128xbf16, #tpu.memory_space<vmem>>, %arg3: memref<1x128xf32, #tpu.memory_space<vmem>>, %arg4: memref<1x128xf32, #tpu.memory_space<vmem>>, %arg5: memref<1x128xf32, #tpu.memory_space<vmem>>) attributes {dimension_semantics = [#tpu.dimension_semantics<arbitrary>], iteration_bounds = array<i64: 4>, scalar_prefetch = 0 : i64, scratch_operands = 0 : i64, tpu.core_type = #tpu.core_type<tc>, window_params = [{transform_indices = @transform_0, window_bounds = array<i64: 128, 32>}, {pipeline_mode = #tpu.pipeline_mode<synchronous>, transform_indices = @transform_1, window_bounds = array<i64: 32, 128>}, {pipeline_mode = #tpu.pipeline_mode<synchronous>, transform_indices = @transform_2, window_bounds = array<i64: 1, 128>}, {pipeline_mode = #tpu.pipeline_mode<synchronous>, transform_indices = @transform_3, window_bounds = array<i64: 1, 128>}, {pipeline_mode = #tpu.pipeline_mode<synchronous>, transform_indices = @transform_4, window_bounds = array<i64: 1, 128>}]} {
    %c0_i32 = arith.constant 0 : i32
    %0 = arith.cmpi eq, %arg0, %c0_i32 : i32
    %1 = arith.extui %0 : i1 to i32
    %c0_i32_0 = arith.constant 0 : i32
    %2 = arith.cmpi ne, %1, %c0_i32_0 : i32
    scf.if %2 {
      %cst_17 = arith.constant 0.000000e+00 : f32
      %22 = vector.broadcast %cst_17 : f32 to vector<1x128xf32>
      %c0_18 = arith.constant 0 : index
      %c0_19 = arith.constant 0 : index
      %23 = vector.load %arg4[%c0_18, %c0_19] : memref<1x128xf32, #tpu.memory_space<vmem>>, vector<1x128xf32>
      tpu.vector_store %arg4[%c0_18, %c0_19], %22 {strides = array<i32>} : memref<1x128xf32, #tpu.memory_space<vmem>>, vector<1x128xf32>,
      %cst_20 = arith.constant 0.000000e+00 : f32
      %24 = vector.broadcast %cst_20 : f32 to vector<1x128xf32>
      %c0_21 = arith.constant 0 : index
      %c0_22 = arith.constant 0 : index
      %25 = vector.load %arg5[%c0_21, %c0_22] : memref<1x128xf32, #tpu.memory_space<vmem>>, vector<1x128xf32>
      tpu.vector_store %arg5[%c0_21, %c0_22], %24 {strides = array<i32>} : memref<1x128xf32, #tpu.memory_space<vmem>>, vector<1x128xf32>,
    } else {
    }
    %c0 = arith.constant 0 : index
    %c0_1 = arith.constant 0 : index
    %3 = vector.load %arg1[%c0, %c0_1] : memref<128x32xbf16, #tpu.memory_space<vmem>>, vector<128x32xbf16>
    %c0_2 = arith.constant 0 : index
    %c0_3 = arith.constant 0 : index
    %4 = vector.load %arg2[%c0_2, %c0_3] : memref<32x128xbf16, #tpu.memory_space<vmem>>, vector<32x128xbf16>
    %cst = arith.constant dense<0.000000e+00> : vector<128x128xf32>
    %5 = tpu.matmul %3, %4, %cst {dimension_numbers = #tpu.dot_dimension_numbers<[1], [0], [0], [1], [0, 0, 1, 1], [], []>} : vector<128x32xbf16>, vector<32x128xbf16>, vector<128x128xf32> -> vector<128x128xf32>
    %c0_4 = arith.constant 0 : index
    %c0_5 = arith.constant 0 : index
    %6 = vector.load %arg3[%c0_4, %c0_5] : memref<1x128xf32, #tpu.memory_space<vmem>>, vector<1x128xf32>
    %7 = vector.broadcast %6 : vector<1x128xf32> to vector<128x128xf32>
    %8 = arith.addf %5, %7 : vector<128x128xf32>
    %cst_6 = arith.constant 0.000000e+00 : f32
    %9 = vector.broadcast %cst_6 : f32 to vector<128x128xf32>
    %10 = arith.maximumf %8, %9 : vector<128x128xf32>
    %c0_7 = arith.constant 0 : index
    %c0_8 = arith.constant 0 : index
    %11 = vector.load %arg4[%c0_7, %c0_8] : memref<1x128xf32, #tpu.memory_space<vmem>>, vector<1x128xf32>
    %cst_9 = arith.constant dense<0.000000e+00> : vector<128xf32>
    %12 = vector.multi_reduction <add>, %10, %cst_9 [0] : vector<128x128xf32> to vector<128xf32>
    %13 = vector.shape_cast %12 : vector<128xf32> to vector<1x128xf32>
    %14 = arith.addf %11, %13 : vector<1x128xf32>
    %c0_10 = arith.constant 0 : index
    %c0_11 = arith.constant 0 : index
    %15 = vector.load %arg4[%c0_10, %c0_11] : memref<1x128xf32, #tpu.memory_space<vmem>>, vector<1x128xf32>
    tpu.vector_store %arg4[%c0_10, %c0_11], %14 {strides = array<i32>} : memref<1x128xf32, #tpu.memory_space<vmem>>, vector<1x128xf32>,
    %c0_12 = arith.constant 0 : index
    %c0_13 = arith.constant 0 : index
    %16 = vector.load %arg5[%c0_12, %c0_13] : memref<1x128xf32, #tpu.memory_space<vmem>>, vector<1x128xf32>
    %17 = arith.mulf %10, %10 : vector<128x128xf32>
    %cst_14 = arith.constant dense<0.000000e+00> : vector<128xf32>
    %18 = vector.multi_reduction <add>, %17, %cst_14 [0] : vector<128x128xf32> to vector<128xf32>
    %19 = vector.shape_cast %18 : vector<128xf32> to vector<1x128xf32>
    %20 = arith.addf %16, %19 : vector<1x128xf32>
    %c0_15 = arith.constant 0 : index
    %c0_16 = arith.constant 0 : index
    %21 = vector.load %arg5[%c0_15, %c0_16] : memref<1x128xf32, #tpu.memory_space<vmem>>, vector<1x128xf32>
    tpu.vector_store %arg5[%c0_15, %c0_16], %20 {strides = array<i32>} : memref<1x128xf32, #tpu.memory_space<vmem>>, vector<1x128xf32>,
    return
  }
  func.func @transform_0(%arg0: i32) -> (i32, i32) {
    %c0_i32 = arith.constant 0 : i32
    %c0_i32_0 = arith.constant 0 : i32
    return %arg0, %c0_i32 : i32, i32
  }
  func.func @transform_1(%arg0: i32) -> (i32, i32) {
    %c0_i32 = arith.constant 0 : i32
    %c0_i32_0 = arith.constant 0 : i32
    %c0_i32_1 = arith.constant 0 : i32
    return %c0_i32, %c0_i32_0 : i32, i32
  }
  func.func @transform_2(%arg0: i32) -> (i32, i32) {
    %c0_i32 = arith.constant 0 : i32
    %c0_i32_0 = arith.constant 0 : i32
    %c0_i32_1 = arith.constant 0 : i32
    return %c0_i32, %c0_i32_0 : i32, i32
  }
  func.func @transform_3(%arg0: i32) -> (i32, i32) {
    %c0_i32 = arith.constant 0 : i32
    %c0_i32_0 = arith.constant 0 : i32
    %c0_i32_1 = arith.constant 0 : i32
    return %c0_i32, %c0_i32_0 : i32, i32
  }
  func.func @transform_4(%arg0: i32) -> (i32, i32) {
    %c0_i32 = arith.constant 0 : i32
    %c0_i32_0 = arith.constant 0 : i32
    %c0_i32_1 = arith.constant 0 : i32
    return %c0_i32, %c0_i32_0 : i32, i32
  }
}

</mosaic_0001>

<llo_original>
// kernel: tpu_custom_call.1
$region0: #{tpu_custom_call.1}
  #allocation0 [shape = 'u32[]', space=smem, size = 0x4, offset = 0x4, fixed_abs, tag = 'smem constant byte address 0x4 - core index']
  #allocation1 [shape = 'u32[144,128]{1,0:T(1,128)}', space=vmem, size = 0x12000, scoped, tag = 'internal scratch']
  %s0 = inlined_call_operand.vmem [shape: bf16[512,32], index: 0, kind: input, shape index: {}]
  %s1 = inlined_call_operand.vmem [shape: bf16[32,128], index: 1, kind: input, shape index: {}]
  %s2 = inlined_call_operand.vmem [shape: f32[1,128], index: 2, kind: input, shape index: {}]
  %s3 = inlined_call_operand.hbm [shape: f32[1,128], index: 3, kind: output, shape index: {0}]
  %s4 = inlined_call_operand.hbm [shape: f32[1,128], index: 4, kind: output, shape index: {1}]
  %5 = xla_tuple %s3, %s4
  %s6 = sld [smem:[#allocation0]]
  $region57: #{tpu_custom_call.1} parent=0
    _
  %s8 = ssub.s32 1, %s6
  %s9 = scalar_select 0, %s8, %s6
  $region1: #{tpu_custom_call.1} parent=0
    #allocation2 [shape = 'u8[512]{0}', space=vmem, size = 0x400, scoped, tag = 'output window, operand 0, single buffered']
    #allocation3 [shape = 's32[2]{0}', space=sflag, size = 0x8, scoped, tag = 'scoped memory for tpu_custom_call.1']
    #allocation4 [shape = 'u8[512]{0}', space=vmem, size = 0x400, scoped, tag = 'output window, operand 1, single buffered']
    #allocation5 [shape = 's32[1]{0}', space=sflag, size = 0x4, scoped, tag = 'scoped memory for tpu_custom_call.1']
    %10 = vsyncpa [#allocation3], 0
    %11 = vsyncpa [#allocation5], 0
    loop: start=0, step=1, limit=6
    $region2: #{tpu_custom_call.1} parent=1 // loop_pre_header
      _
    $region3: #{tpu_custom_call.1} parent=1 // loop_header
      %s13 = sphi 0, %s17
      %p14 = scmp.ge.s32.totalorder %s13, 6
      %s23 = sphi 0, %s25
      %s26 = sphi 0, %s23
      %s27 = sphi 0, %s26
      %s43 = sphi 0, %s27
      %s47 = sphi 0, %s47
      %s49 = sphi 0, %s47
      %s50 = sphi 0, %s49
      %s64 = sphi 0, %s50
      %s68 = sphi 0, %s68
      %s70 = sphi 0, %s68
      %s71 = sphi 0, %s70
      %s85 = sphi 0, %s71
      %s89 = sphi 0, %s89
      %s91 = sphi 0, %s89
      %s92 = sphi 0, %s91
      %s106 = sphi 0, %s92
      %s110 = sphi 0, %s110
      %s112 = sphi 0, %s110
      %s113 = sphi 0, %s112
      %s127 = sphi 0, %s113
    $region4: #{tpu_custom_call.1} parent=1 // loop_header_branch
      %16 = sbr.rel (%p14) target = $region8
    $region5: #{tpu_custom_call.1} parent=1 // loop_body
      %s18 = ssub.s32 %s13, 1
      %s19 = ssub.s32 %s13, 2
      %s20 = sadd.s32 %s13, 1
      %s21 = ssub.s32 %s13, %s20
      %p22 = scmp.eq.s32.totalorder %s21, 0
      %s24 = sadd.s32 %s23, 1
      %s25 = scalar_select %p22, %s23, %s24
      %p28 = pneg %p22
      %p29 = scmp.eq.s32.totalorder %s13, 3
      %p30 = por %p28, %p29
      %p31 = scmp.ne.s32.totalorder %s23, %s26
      %p32 = scmp.eq.s32.totalorder %s13, 0
      %p33 = por %p31, %p32
      %p34 = scmp.ne.s32.totalorder %s23, %s26
      %p35 = scmp.eq.s32.totalorder %s18, 3
      %p36 = por %p34, %p35
      %p37 = scmp.ne.s32.totalorder %s26, %s27
      %p38 = scmp.eq.s32.totalorder %s18, 0
      %p39 = por %p37, %p38
      %p40 = scmp.ne.s32.totalorder %s26, %s27
      %p41 = scmp.eq.s32.totalorder %s19, 3
      %p42 = por %p40, %p41
      %p44 = scmp.ne.s32.totalorder %s27, %s43
      %p45 = scmp.eq.s32.totalorder %s19, 0
      %p46 = por %p44, %p45
      %s48 = sadd.s32 %s47, 1
      %p51 = scmp.eq.s32.totalorder %s13, 3
      %p52 = scmp.ne.s32.totalorder %s47, %s49
      %p53 = scmp.eq.s32.totalorder %s13, 0
      %p54 = por %p52, %p53
      %p55 = scmp.ne.s32.totalorder %s47, %s49
      %p56 = scmp.eq.s32.totalorder %s18, 3
      %p57 = por %p55, %p56
      %p58 = scmp.ne.s32.totalorder %s49, %s50
      %p59 = scmp.eq.s32.totalorder %s18, 0
      %p60 = por %p58, %p59
      %p61 = scmp.ne.s32.totalorder %s49, %s50
      %p62 = scmp.eq.s32.totalorder %s19, 3
      %p63 = por %p61, %p62
      %p65 = scmp.ne.s32.totalorder %s50, %s64
      %p66 = scmp.eq.s32.totalorder %s19, 0
      %p67 = por %p65, %p66
      %s69 = sadd.s32 %s68, 1
      %p72 = scmp.eq.s32.totalorder %s13, 3
      %p73 = scmp.ne.s32.totalorder %s68, %s70
      %p74 = scmp.eq.s32.totalorder %s13, 0
      %p75 = por %p73, %p74
      %p76 = scmp.ne.s32.totalorder %s68, %s70
      %p77 = scmp.eq.s32.totalorder %s18, 3
      %p78 = por %p76, %p77
      %p79 = scmp.ne.s32.totalorder %s70, %s71
      %p80 = scmp.eq.s32.totalorder %s18, 0
      %p81 = por %p79, %p80
      %p82 = scmp.ne.s32.totalorder %s70, %s71
      %p83 = scmp.eq.s32.totalorder %s19, 3
      %p84 = por %p82, %p83
      %p86 = scmp.ne.s32.totalorder %s71, %s85
      %p87 = scmp.eq.s32.totalorder %s19, 0
      %p88 = por %p86, %p87
      %s90 = sadd.s32 %s89, 1
      %p93 = scmp.eq.s32.totalorder %s13, 3
      %p94 = scmp.ne.s32.totalorder %s89, %s91
      %p95 = scmp.eq.s32.totalorder %s13, 0
      %p96 = por %p94, %p95
      %p97 = scmp.ne.s32.totalorder %s89, %s91
      %p98 = scmp.eq.s32.totalorder %s18, 3
      %p99 = por %p97, %p98
      %p100 = scmp.ne.s32.totalorder %s91, %s92
      %p101 = scmp.eq.s32.totalorder %s18, 0
      %p102 = por %p100, %p101
      %p103 = scmp.ne.s32.totalorder %s91, %s92
      %p104 = scmp.eq.s32.totalorder %s19, 3
      %p105 = por %p103, %p104
      %p107 = scmp.ne.s32.totalorder %s92, %s106
      %p108 = scmp.eq.s32.totalorder %s19, 0
      %p109 = por %p107, %p108
      %s111 = sadd.s32 %s110, 1
      %p114 = scmp.eq.s32.totalorder %s13, 3
      %p115 = scmp.ne.s32.totalorder %s110, %s112
      %p116 = scmp.eq.s32.totalorder %s13, 0
      %p117 = por %p115, %p116
      %p118 = scmp.ne.s32.totalorder %s110, %s112
      %p119 = scmp.eq.s32.totalorder %s18, 3
      %p120 = por %p118, %p119
      %p121 = scmp.ne.s32.totalorder %s112, %s113
      %p122 = scmp.eq.s32.totalorder %s18, 0
      %p123 = por %p121, %p122
      %p124 = scmp.ne.s32.totalorder %s112, %s113
      %p125 = scmp.eq.s32.totalorder %s19, 3
      %p126 = por %p124, %p125
      %p128 = scmp.ne.s32.totalorder %s113, %s127
      %p129 = scmp.eq.s32.totalorder %s19, 0
      %p130 = por %p128, %p129
      %p131 = scmp.le.s32.totalorder 1, %s13
      %p132 = scmp.lt.s32.totalorder %s13, 5
      %p133 = pnand %p131, %p132
      %p134 = pneg %p133
      // Predicated region
      $region9: #{tpu_custom_call.1} parent=5 // pred_check
        _
      $region10: #{tpu_custom_call.1} parent=5 // pred_check_branch
        %136 = sbr.rel (%p133) target = $region12
      $region11: #{tpu_custom_call.1} parent=5 // pred_region
        %s137 = ssub.s32 %s13, 1
        // Predicated region
        $region13: #{tpu_custom_call.1} parent=11 // pred_check
          %p138 = pneg %p60
        $region14: #{tpu_custom_call.1} parent=11 // pred_check_branch
          %140 = sbr.rel (%p138) target = $region16
        $region15: #{tpu_custom_call.1} parent=11 // pred_region
          _
        $region16: #{tpu_custom_call.1} parent=11 // pred_fallthru
          _
        // Predicated region
        $region17: #{tpu_custom_call.1} parent=11 // pred_check
          %p141 = pneg %p81
        $region18: #{tpu_custom_call.1} parent=11 // pred_check_branch
          %143 = sbr.rel (%p141) target = $region20
        $region19: #{tpu_custom_call.1} parent=11 // pred_region
          _
        $region20: #{tpu_custom_call.1} parent=11 // pred_fallthru
          _
      $region12: #{tpu_custom_call.1} parent=5 // pred_fallthru
        _
      %p144 = scmp.lt.s32.totalorder %s13, 4
      // Predicated region
      $region21: #{tpu_custom_call.1} parent=5 // pred_check
        %p145 = pneg %p144
      $region22: #{tpu_custom_call.1} parent=5 // pred_check_branch
        %147 = sbr.rel (%p145) target = $region24
      $region23: #{tpu_custom_call.1} parent=5 // pred_region
        // Predicated region
        $region25: #{tpu_custom_call.1} parent=23 // pred_check
          %p148 = pneg %p33
        $region26: #{tpu_custom_call.1} parent=23 // pred_check_branch
          %150 = sbr.rel (%p148) target = $region28
        $region27: #{tpu_custom_call.1} parent=23 // pred_region
          %s151 = smul.u32 16, %s13
          %p152 = scmp.lt.s32.totalorder %s151, 63
          %s153 = scalar_select %p152, %s151, 63
          %s154 = smul.addr %s153, 4
          %s155 = scalar_lea.vmem %s0, %s154
          %s156 = smul.u32 16, %s13
        $region28: #{tpu_custom_call.1} parent=23 // pred_fallthru
          _
      $region24: #{tpu_custom_call.1} parent=5 // pred_fallthru
        _
      %p157 = scmp.le.s32.totalorder 1, %s13
      %p158 = scmp.lt.s32.totalorder %s13, 5
      %p159 = pnand %p157, %p158
      %p160 = pneg %p159
      // Predicated region
      $region29: #{tpu_custom_call.1} parent=5 // pred_check
        _
      $region30: #{tpu_custom_call.1} parent=5 // pred_check_branch
        %162 = sbr.rel (%p159) target = $region32
      $region31: #{tpu_custom_call.1} parent=5 // pred_region
        %s163 = ssub.s32 %s13, 1
        %s164 = smul.u32 16, %s18
        %p165 = scmp.lt.s32.totalorder %s164, 63
        %s166 = scalar_select %p165, %s164, 63
        %s167 = smul.addr %s166, 4
        %s168 = scalar_lea.vmem %s0, %s167
        %p169 = pneg %p39
        %p170 = pneg %p36
        %p171 = pneg %p60
        %p172 = pneg %p57
        %p173 = pneg %p81
        %p174 = pneg %p78
        %p175 = pneg %p102
        %p176 = pneg %p99
        %p177 = pneg %p123
        %p178 = pneg %p120
        %s179 = smul.u32 16, %s18
        %p180 = scmp.lt.s32.totalorder %s179, 63
        %s181 = scalar_select %p180, %s179, 63
        %s182 = smul.addr %s181, 4
        %s183 = scalar_lea.vmem %s0, %s182
        %s184 = smul.u32 16, %s18
        %p186 = scmp.eq.s32.totalorder %s18, 0
        // Predicated region
        $region33: #{tpu_custom_call.1} parent=31 // pred_check
          %p187 = pneg %p186
        $region34: #{tpu_custom_call.1} parent=31 // pred_check_branch
          %189 = sbr.rel (%p187) target = $region36
        $region35: #{tpu_custom_call.1} parent=31 // pred_region
          %190 = vst [vmem:[#allocation2] sm:$0x1] 0.0
          %191 = vst [vmem:[#allocation4] sm:$0x1] 0.0
        $region36: #{tpu_custom_call.1} parent=31 // pred_fallthru
          _
        %v192 = vld [vmem:[%s183] sm:$0xf]
        %v193 = vld [vmem:[%s183 + $0x4] sm:$0xf]
        %v194 = vld [vmem:[%s183 + $0x8] sm:$0xf]
        %v195 = vld [vmem:[%s183 + $0xc] sm:$0xf]
        %v196 = vld [vmem:[%s183 + $0x10] sm:$0xf]
        %v197 = vld [vmem:[%s183 + $0x14] sm:$0xf]
        %v198 = vld [vmem:[%s183 + $0x18] sm:$0xf]
        %v199 = vld [vmem:[%s183 + $0x1c] sm:$0xf]
        %v200 = vld [vmem:[%s183 + $0x20] sm:$0xf]
        %v201 = vld [vmem:[%s183 + $0x24] sm:$0xf]
        %v202 = vld [vmem:[%s183 + $0x28] sm:$0xf]
        %v203 = vld [vmem:[%s183 + $0x2c] sm:$0xf]
        %v204 = vld [vmem:[%s183 + $0x30] sm:$0xf]
        %v205 = vld [vmem:[%s183 + $0x34] sm:$0xf]
        %v206 = vld [vmem:[%s183 + $0x38] sm:$0xf]
        %v207 = vld [vmem:[%s183 + $0x3c] sm:$0xf]
        %v208 = vld [vmem:[%s1] sm:$0xf]
        %v209 = vld [vmem:[%s1 + $0x4] sm:$0xf]
        %v210 = vld [vmem:[%s1 + $0x8] sm:$0xf]
        %v211 = vld [vmem:[%s1 + $0xc] sm:$0xf]
        %v212 = vld [vmem:[%s2] sm:$0x1]
        %v214 = vlaneseq
        %v215 = vshrl.u32 %v214, 7
        %v216 = vsub.s32 0, %v215
        %v217 = vrot.slane %v212, %v216
        %v235 = vunpack.c.l.b16 %v192
        %v236 = vunpack.c.l.b16 %v193
        %v237 = vunpack.c.l.b16 %v194
        %v238 = vunpack.c.l.b16 %v195
        %v239 = vunpack.c.l.b16 %v196
        %v240 = vunpack.c.l.b16 %v197
        %v241 = vunpack.c.l.b16 %v198
        %v242 = vunpack.c.l.b16 %v199
        %v243 = vunpack.c.l.b16 %v200
        %v244 = vunpack.c.l.b16 %v201
        %v245 = vunpack.c.l.b16 %v202
        %v246 = vunpack.c.l.b16 %v203
        %v247 = vunpack.c.l.b16 %v204
        %v248 = vunpack.c.l.b16 %v205
        %v249 = vunpack.c.l.b16 %v206
        %v250 = vunpack.c.l.b16 %v207
        %v251 = vpack.c.b16 %v236, %v235
        %v252 = vpack.c.b16 %v238, %v237
        %v253 = vpack.c.b16 %v240, %v239
        %v254 = vpack.c.b16 %v242, %v241
        %v255 = vpack.c.b16 %v244, %v243
        %v256 = vpack.c.b16 %v246, %v245
        %v257 = vpack.c.b16 %v248, %v247
        %v258 = vpack.c.b16 %v250, %v249
        %v263 = vunpack.c.l.b16 %v208
        %v264 = vunpack.c.l.b16 %v209
        %v265 = vunpack.c.l.b16 %v210
        %v266 = vunpack.c.l.b16 %v211
        %v267 = vpack.c.b16 %v264, %v263
        %v268 = vpack.c.b16 %v266, %v265
        %vm271 = vcmask 261120
        %v273 = vsel %vm271, %v251, 0
        %v276 = vsel %vm271, %v252, 0
        %v279 = vsel %vm271, %v253, 0
        %v282 = vsel %vm271, %v254, 0
        %v285 = vsel %vm271, %v255, 0
        %v288 = vsel %vm271, %v256, 0
        %v291 = vsel %vm271, %v257, 0
        %v294 = vsel %vm271, %v258, 0
        %296 = vmatprep.subr.bf16.mxu0 0
        %297 = vmatpush1.bf16.msra.mxu0 %v267
        %298 = vmatprep.subr.bf16.mxu0 0
        %299 = vmatpush1.bf16.msra.mxu0 %v268
        %300 = vmatprep.subr.bf16.mxu0 0
        %301 = vmatpush1.bf16.msra.mxu0 0
        %302 = vmatprep.subr.bf16.mxu0 0
        %303 = vmatpush1.bf16.msra.mxu0 0
        %304 = vmatprep.subr.bf16.mxu0 0
        %305 = vmatpush1.bf16.msra.mxu0 0
        %306 = vmatprep.subr.bf16.mxu0 0
        %307 = vmatpush1.bf16.msra.mxu0 0
        %308 = vmatprep.subr.bf16.mxu0 0
        %309 = vmatpush1.bf16.msra.mxu0 0
        %310 = vmatprep.subr.bf16.mxu0 0
        %311 = vmatpush1.bf16.msra.mxu0 0
        %312 = vmatprep.subr.bf16.mxu0 0
        %313 = vmatpush1.bf16.msra.mxu0 0
        %314 = vmatprep.subr.bf16.mxu0 0
        %315 = vmatpush1.bf16.msra.mxu0 0
        %316 = vmatprep.subr.bf16.mxu0 0
        %317 = vmatpush1.bf16.msra.mxu0 0
        %318 = vmatprep.subr.bf16.mxu0 0
        %319 = vmatpush1.bf16.msra.mxu0 0
        %320 = vmatprep.subr.bf16.mxu0 0
        %321 = vmatpush1.bf16.msra.mxu0 0
        %322 = vmatprep.subr.bf16.mxu0 0
        %323 = vmatpush1.bf16.msra.mxu0 0
        %324 = vmatprep.subr.bf16.mxu0 0
        %325 = vmatpush1.bf16.msra.mxu0 0
        %326 = vmatprep.subr.bf16.mxu0 0
        %327 = vmatpush1.bf16.msra.mxu0 0
        %328 = vmatprep.mubr.bf16.mxu0 0
        %329 = vmatmul.mubr.bf16.gmra.mrb[0].mxu0 %v273
        %v330 = vpop.f32.mrb[0].mxu0
        %v331 = vadd.f32 %v217, %v330
        %v332 = vpop.f32.mrb[0].mxu0
        %v333 = vpop.f32.mrb[0].mxu0
        %v334 = vadd.f32 %v217, %v333
        %v335 = vpop.f32.mrb[0].mxu0
        %336 = vmatprep.mubr.bf16.mxu0 0
        %337 = vmatmul.mubr.bf16.gmra.mrb[0].mxu0 %v276
        %v338 = vpop.f32.mrb[0].mxu0
        %v339 = vadd.f32 %v217, %v338
        %v340 = vpop.f32.mrb[0].mxu0
        %v341 = vpop.f32.mrb[0].mxu0
        %v342 = vadd.f32 %v217, %v341
        %v343 = vpop.f32.mrb[0].mxu0
        %344 = vmatprep.mubr.bf16.mxu0 0
        %345 = vmatmul.mubr.bf16.gmra.mrb[0].mxu0 %v279
        %v346 = vpop.f32.mrb[0].mxu0
        %v347 = vadd.f32 %v217, %v346
        %v348 = vpop.f32.mrb[0].mxu0
        %v349 = vpop.f32.mrb[0].mxu0
        %v350 = vadd.f32 %v217, %v349
        %v351 = vpop.f32.mrb[0].mxu0
        %352 = vmatprep.mubr.bf16.mxu0 0
        %353 = vmatmul.mubr.bf16.gmra.mrb[0].mxu0 %v282
        %v354 = vpop.f32.mrb[0].mxu0
        %v355 = vadd.f32 %v217, %v354
        %v356 = vpop.f32.mrb[0].mxu0
        %v357 = vpop.f32.mrb[0].mxu0
        %v358 = vadd.f32 %v217, %v357
        %v359 = vpop.f32.mrb[0].mxu0
        %360 = vmatprep.mubr.bf16.mxu0 0
        %361 = vmatmul.mubr.bf16.gmra.mrb[0].mxu0 %v285
        %v362 = vpop.f32.mrb[0].mxu0
        %v363 = vadd.f32 %v217, %v362
        %v364 = vpop.f32.mrb[0].mxu0
        %v365 = vpop.f32.mrb[0].mxu0
        %v366 = vadd.f32 %v217, %v365
        %v367 = vpop.f32.mrb[0].mxu0
        %368 = vmatprep.mubr.bf16.mxu0 0
        %369 = vmatmul.mubr.bf16.gmra.mrb[0].mxu0 %v288
        %v370 = vpop.f32.mrb[0].mxu0
        %v371 = vadd.f32 %v217, %v370
        %v372 = vpop.f32.mrb[0].mxu0
        %v373 = vpop.f32.mrb[0].mxu0
        %v374 = vadd.f32 %v217, %v373
        %v375 = vpop.f32.mrb[0].mxu0
        %376 = vmatprep.mubr.bf16.mxu0 0
        %377 = vmatmul.mubr.bf16.gmra.mrb[0].mxu0 %v291
        %v378 = vpop.f32.mrb[0].mxu0
        %v379 = vadd.f32 %v217, %v378
        %v380 = vpop.f32.mrb[0].mxu0
        %v381 = vpop.f32.mrb[0].mxu0
        %v382 = vadd.f32 %v217, %v381
        %v383 = vpop.f32.mrb[0].mxu0
        %384 = vmatprep.mubr.bf16.mxu0 0
        %385 = vmatmul.mubr.bf16.gmra.mrb[0].mxu0 %v294
        %v386 = vpop.f32.mrb[0].mxu0
        %v387 = vadd.f32 %v217, %v386
        %v388 = vpop.f32.mrb[0].mxu0
        %v389 = vpop.f32.mrb[0].mxu0
        %v390 = vadd.f32 %v217, %v389
        %v391 = vpop.f32.mrb[0].mxu0
        %392 = vdwg.mxu0
        %v393 = vmax.f32 %v331, 0.0
        %v394 = vmax.f32 %v334, 0.0
        %v395 = vmax.f32 %v339, 0.0
        %v396 = vmax.f32 %v342, 0.0
        %v397 = vmax.f32 %v347, 0.0
        %v398 = vmax.f32 %v350, 0.0
        %v399 = vmax.f32 %v355, 0.0
        %v400 = vmax.f32 %v358, 0.0
        %v401 = vmax.f32 %v363, 0.0
        %v402 = vmax.f32 %v366, 0.0
        %v403 = vmax.f32 %v371, 0.0
        %v404 = vmax.f32 %v374, 0.0
        %v405 = vmax.f32 %v379, 0.0
        %v406 = vmax.f32 %v382, 0.0
        %v407 = vmax.f32 %v387, 0.0
        %v408 = vmax.f32 %v390, 0.0
        %v409 = vld [vmem:[#allocation2] sm:$0x1]
        %v410 = vadd.f32 %v393, %v394
        %v411 = vadd.f32 %v410, %v395
        %v412 = vadd.f32 %v411, %v396
        %v413 = vadd.f32 %v412, %v397
        %v414 = vadd.f32 %v413, %v398
        %v415 = vadd.f32 %v414, %v399
        %v416 = vadd.f32 %v415, %v400
        %v417 = vadd.f32 %v416, %v401
        %v418 = vadd.f32 %v417, %v402
        %v419 = vadd.f32 %v418, %v403
        %v420 = vadd.f32 %v419, %v404
        %v421 = vadd.f32 %v420, %v405
        %v422 = vadd.f32 %v421, %v406
        %v423 = vadd.f32 %v422, %v407
        %v424 = vadd.f32 %v423, %v408
        %v425 = vrot.slane %v424, 4
        %v426 = vadd.f32 %v424, %v425
        %v427 = vrot.slane %v426, 2
        %v428 = vadd.f32 %v426, %v427
        %v429 = vrot.slane %v428, 1
        %v430 = vadd.f32 %v428, %v429
        %v431 = vadd.f32 %v409, %v430
        %432 = vst [vmem:[#allocation2] sm:$0x1] %v431
        %v433 = vld [vmem:[#allocation4] sm:$0x1]
        %v434 = vmul.f32 %v393, %v393
        %v435 = vmul.f32 %v394, %v394
        %v436 = vmul.f32 %v395, %v395
        %v437 = vmul.f32 %v396, %v396
        %v438 = vmul.f32 %v397, %v397
        %v439 = vmul.f32 %v398, %v398
        %v440 = vmul.f32 %v399, %v399
        %v441 = vmul.f32 %v400, %v400
        %v442 = vmul.f32 %v401, %v401
        %v443 = vmul.f32 %v402, %v402
        %v444 = vmul.f32 %v403, %v403
        %v445 = vmul.f32 %v404, %v404
        %v446 = vmul.f32 %v405, %v405
        %v447 = vmul.f32 %v406, %v406
        %v448 = vmul.f32 %v407, %v407
        %v449 = vmul.f32 %v408, %v408
        %v450 = vadd.f32 %v434, %v435
        %v451 = vadd.f32 %v450, %v436
        %v452 = vadd.f32 %v451, %v437
        %v453 = vadd.f32 %v452, %v438
        %v454 = vadd.f32 %v453, %v439
        %v455 = vadd.f32 %v454, %v440
        %v456 = vadd.f32 %v455, %v441
        %v457 = vadd.f32 %v456, %v442
        %v458 = vadd.f32 %v457, %v443
        %v459 = vadd.f32 %v458, %v444
        %v460 = vadd.f32 %v459, %v445
        %v461 = vadd.f32 %v460, %v446
        %v462 = vadd.f32 %v461, %v447
        %v463 = vadd.f32 %v462, %v448
        %v464 = vadd.f32 %v463, %v449
        %v465 = vrot.slane %v464, 4
        %v466 = vadd.f32 %v464, %v465
        %v467 = vrot.slane %v466, 2
        %v468 = vadd.f32 %v466, %v467
        %v469 = vrot.slane %v468, 1
        %v470 = vadd.f32 %v468, %v469
        %v471 = vadd.f32 %v433, %v470
        %472 = vst [vmem:[#allocation4] sm:$0x1] %v471
        // Predicated region
        $region37: #{tpu_custom_call.1} parent=31 // pred_check
          %p473 = pneg %p99
        $region38: #{tpu_custom_call.1} parent=31 // pred_check_branch
          %475 = sbr.rel (%p473) target = $region40
        $region39: #{tpu_custom_call.1} parent=31 // pred_region
          %s477 = ssub.s32 16, 16
          %478 = vsyncadd [#allocation3], %s477
          %s480 = sshll.u32 [#allocation2], 4
          %s481 = int_to_ptr.vmem [resolvable:$true] %s480
          %483 = dma.vmem_to_hbm [thread:$0]  %s481, 16, %s3, [#allocation3]
        $region40: #{tpu_custom_call.1} parent=31 // pred_fallthru
          _
        // Predicated region
        $region41: #{tpu_custom_call.1} parent=31 // pred_check
          %p484 = pneg %p120
        $region42: #{tpu_custom_call.1} parent=31 // pred_check_branch
          %486 = sbr.rel (%p484) target = $region44
        $region43: #{tpu_custom_call.1} parent=31 // pred_region
          %s488 = ssub.s32 16, 16
          %489 = vsyncadd [#allocation5], %s488
          %s491 = sshll.u32 [#allocation4], 4
          %s492 = int_to_ptr.vmem [resolvable:$true] %s491
          %494 = dma.vmem_to_hbm [thread:$0]  %s492, 16, %s4, [#allocation5]
        $region44: #{tpu_custom_call.1} parent=31 // pred_fallthru
          _
        // Predicated region
        $region45: #{tpu_custom_call.1} parent=31 // pred_check
          %p495 = pneg %p99
        $region46: #{tpu_custom_call.1} parent=31 // pred_check_branch
          %497 = sbr.rel (%p495) target = $region48
        $region47: #{tpu_custom_call.1} parent=31 // pred_region
          %498 = dma.done [#allocation3], 16
        $region48: #{tpu_custom_call.1} parent=31 // pred_fallthru
          _
        // Predicated region
        $region49: #{tpu_custom_call.1} parent=31 // pred_check
          %p499 = pneg %p120
        $region50: #{tpu_custom_call.1} parent=31 // pred_check_branch
          %501 = sbr.rel (%p499) target = $region52
        $region51: #{tpu_custom_call.1} parent=31 // pred_region
          %502 = dma.done [#allocation5], 16
        $region52: #{tpu_custom_call.1} parent=31 // pred_fallthru
          _
      $region32: #{tpu_custom_call.1} parent=5 // pred_fallthru
        _
      %p503 = scmp.le.s32.totalorder 2, %s13
      // Predicated region
      $region53: #{tpu_custom_call.1} parent=5 // pred_check
        %p504 = pneg %p503
      $region54: #{tpu_custom_call.1} parent=5 // pred_check_branch
        %506 = sbr.rel (%p504) target = $region56
      $region55: #{tpu_custom_call.1} parent=5 // pred_region
        %s507 = ssub.s32 %s13, 2
      $region56: #{tpu_custom_call.1} parent=5 // pred_fallthru
        _
    $region6: #{tpu_custom_call.1} parent=1 // loop_footer
      %s17 = sadd.s32 1, %s13
    $region7: #{tpu_custom_call.1} parent=1 // loop_footer_branch
      %12 = sbr.rel target = $region3
    $region8: #{tpu_custom_call.1} parent=1 // loop_exit
      _
    %508 = vsyncpa [#allocation3], 1
    %s509 = scalar_lea.sflag [#allocation3], 1
    %510 = vsyncpa %s509, 1
    %511 = vsyncpa [#allocation5], 1

</llo_original>
